<compile_context>
chip_gen: v7x
topology: tpu7x:2x2x1
jax: 0.10.0
libtpu: 0.0.40
codegen_flags: <defaults>
</compile_context>

<pallas_src>
import jax
import jax.numpy as jnp
from jax.experimental import pallas as pl
from jax.experimental.pallas import tpu as pltpu


def _round_up(x, m):
    return ((x + m - 1) // m) * m


def _patch_proj_kernel(x_ref, w_ref, b_ref, o_ref):
    # x_ref: [TILE_M, K]   w_ref: [K, E]   b_ref: [1, E] (f32)   o_ref: [TILE_M, E]
    acc = jnp.dot(x_ref[...], w_ref[...], preferred_element_type=jnp.float32)
    o_ref[...] = (acc + b_ref[...]).astype(o_ref.dtype)


def _choose_tile_m(M, tile_m_max, row_bytes, vmem_budget_bytes):
    """Multiple-of-8 tile over M: >=2 blocks when possible (megacore), prefer an
    even block count, keep the double-buffered streamed tiles under the budget."""
    if M <= 8:
        return M
    tile_m = min(tile_m_max, _round_up(pl.cdiv(M, 2), 8))
    while tile_m > 8 and 2 * tile_m * row_bytes > vmem_budget_bytes:
        tile_m = max(8, _round_up(tile_m // 2, 8))
    nblk = pl.cdiv(M, tile_m)
    if nblk > 1 and nblk % 2 == 1:
        tile_m = _round_up(pl.cdiv(M, nblk + 1), 8)
    return tile_m


def _project_patches(xm, wm, bm, out_dtype, tile_m_max=8192):
    """out[M, E] = xm[M, K] @ wm[K, E] + bm, tiled & pipelined over M."""
    M, K = xm.shape
    E = wm.shape[1]

    in_isz = jnp.dtype(xm.dtype).itemsize
    w_isz = jnp.dtype(wm.dtype).itemsize
    b_isz = jnp.dtype(bm.dtype).itemsize
    out_isz = jnp.dtype(out_dtype).itemsize

    # Lane-padded bytes per streamed row: K (48) and E (96) both pad to 128 lanes.
    row_bytes = _round_up(K, 128) * in_isz + _round_up(E, 128) * out_isz
    vmem_budget = 28 * 1024 * 1024
    tile_m = _choose_tile_m(M, tile_m_max, row_bytes, vmem_budget)
    grid = (pl.cdiv(M, tile_m),)

    # Full lane-padded, double-buffered working set (streamed tiles + resident w/b).
    vmem_ws = (2 * tile_m * row_bytes
               + 2 * (_round_up(K, 8) * _round_up(E, 128) * w_isz
                      + 8 * _round_up(E, 128) * b_isz))
    assert vmem_ws < 40 * 1024 * 1024, f"tile too large for VMEM: {vmem_ws} B"

    cost = pl.CostEstimate(
        flops=2 * M * K * E,
        transcendentals=0,
        bytes_accessed=(M * K * in_isz + K * E * w_isz
                        + M * E * out_isz + E * b_isz),
    )

    return pl.pallas_call(
        _patch_proj_kernel,
        out_shape=jax.ShapeDtypeStruct((M, E), out_dtype),
        grid_spec=pltpu.PrefetchScalarGridSpec(
            num_scalar_prefetch=0,
            grid=grid,
            in_specs=[
                pl.BlockSpec((tile_m, K), lambda i: (i, 0)),   # streamed x tile
                pl.BlockSpec((K, E), lambda i: (0, 0)),        # resident weight
                pl.BlockSpec((1, E), lambda i: (0, 0)),        # resident bias
            ],
            out_specs=pl.BlockSpec((tile_m, E), lambda i: (i, 0)),
        ),
        compiler_params=pltpu.CompilerParams(
            dimension_semantics=("parallel",),          # use both TCs on v7x
            vmem_limit_bytes=48 * 1024 * 1024,
            # Allow XLA to fuse the im2col transpose/reshape/cast producer of x
            # into the kernel's input DMA instead of materializing it in HBM.
            allow_input_fusion=[True, False, False],
        ),
        cost_estimate=cost,
    )(xm, wm, bm)


def _prep_weight(weight, bias, compute_dtype):
    # [E, C, p, p] -> [K, E] with K-order (ph, pw, c), matching the patch gather.
    E = weight.shape[0]
    wm = jnp.transpose(weight, (2, 3, 1, 0)).reshape(-1, E).astype(compute_dtype)
    bm = bias.reshape(1, E).astype(jnp.float32)
    return wm, bm


def patch_embed_forward_nhwc(x_nhwc, weight, bias, patch_size=4,
                             compute_dtype=jnp.bfloat16):
    """PatchEmbed forward on NHWC activations (cheap-gather path).

    Args:
      x_nhwc: [B, H, W, C]
      weight: [E, C, p, p]   (PyTorch Conv2d weight layout)
      bias:   [E]
      compute_dtype: dtype for x/weight inside the matmul (default bf16); the
        accumulate + bias stay f32 and the output keeps the input dtype.
        Pass jnp.float32 (or None) for exact-precision compute.
    Returns:
      (out [B, Hc*Wc, E], Hc, Wc)
    """
    p = patch_size
    B, H, W, C = x_nhwc.shape
    E = weight.shape[0]
    out_dtype = x_nhwc.dtype
    if compute_dtype is None:
        compute_dtype = x_nhwc.dtype

    # Cast first so the (possibly materialized) gather below moves half the bytes.
    x = x_nhwc.astype(compute_dtype)

    # Same padding as F.pad in the module (pad bottom/right up to multiple of p).
    pad_h = (-H) % p
    pad_w = (-W) % p
    if pad_h or pad_w:
        x = jnp.pad(x, ((0, 0), (0, pad_h), (0, pad_w), (0, 0)))
    Hp, Wp = H + pad_h, W + pad_w
    Hc, Wc = Hp // p, Wp // p
    L = Hc * Wc

    # im2col in NHWC: free reshape + swap of two middle axes (contiguous p*C
    # chunks).  With allow_input_fusion this producer fuses into the kernel DMA.
    xp = x.reshape(B, Hc, p, Wc, p, C)
    xm = jnp.transpose(xp, (0, 1, 3, 2, 4, 5)).reshape(B * L, p * p * C)  # (ph,pw,c)

    wm, bm = _prep_weight(weight, bias, compute_dtype)
    out = _project_patches(xm, wm, bm, out_dtype).reshape(B, L, E)
    # norm_layer=None -> nn.Identity(): nothing to do.
    return out, Hc, Wc


def patch_embed_forward(x, weight, bias, patch_size=4, compute_dtype=jnp.bfloat16):
    """PyTorch-compatible NCHW entry point.

    Emits a single 6-D transpose straight to the [M, K] patch matrix (no separate
    NCHW->NHWC pass); with allow_input_fusion it can fuse into the kernel DMA.
    """
    p = patch_size
    B, C, H, W = x.shape
    E = weight.shape[0]
    out_dtype = x.dtype
    if compute_dtype is None:
        compute_dtype = x.dtype

    xc = x.astype(compute_dtype)
    pad_h = (-H) % p
    pad_w = (-W) % p
    if pad_h or pad_w:
        xc = jnp.pad(xc, ((0, 0), (0, 0), (0, pad_h), (0, pad_w)))
    Hp, Wp = H + pad_h, W + pad_w
    Hc, Wc = Hp // p, Wp // p
    L = Hc * Wc

    x6 = xc.reshape(B, C, Hc, p, Wc, p)
    xm = jnp.transpose(x6, (0, 2, 4, 3, 5, 1)).reshape(B * L, p * p * C)  # (ph,pw,c)

    wm, bm = _prep_weight(weight, bias, compute_dtype)
    out = _project_patches(xm, wm, bm, out_dtype).reshape(B, L, E)
    return out, Hc, Wc


if __name__ == "__main__":
    key = jax.random.PRNGKey(0)
    k_x, k_w, k_b = jax.random.split(key, 3)

    # Module config: patch_size=4, in_c=3, embed_dim=96.
    B, C, H, W = 2, 3, 16, 16
    p, E = 4, 96

    x = jax.random.normal(k_x, (B, C, H, W), dtype=jnp.float32)
    weight = jax.random.normal(k_w, (E, C, p, p), dtype=jnp.float32) * 0.02
    bias = jax.random.normal(k_b, (E,), dtype=jnp.float32) * 0.02

    def ref_patch_embed(xin, Hc_, Wc_):
        Bp, Cp = xin.shape[0], xin.shape[1]
        xpr = (xin.reshape(Bp, Cp, Hc_, p, Wc_, p)
                  .transpose(0, 2, 4, 1, 3, 5)
                  .reshape(Bp * Hc_ * Wc_, -1))
        return (xpr @ weight.reshape(E, -1).T + bias).reshape(Bp, Hc_ * Wc_, E)

    # --- exact (f32 compute) NCHW path, divisible H/W ---
    out, Hc, Wc = patch_embed_forward(x, weight, bias, patch_size=p,
                                      compute_dtype=jnp.float32)
    out = jax.block_until_ready(out)
    ref = ref_patch_embed(x, Hc, Wc)
    assert out.shape == (B, Hc * Wc, E)
    assert jnp.allclose(out, ref, atol=1e-4, rtol=1e-4)

    # --- exact (f32 compute) NHWC path ---
    x_nhwc = jnp.transpose(x, (0, 2, 3, 1))
    out_nhwc, _, _ = patch_embed_forward_nhwc(x_nhwc, weight, bias, patch_size=p,
                                              compute_dtype=jnp.float32)
    out_nhwc = jax.block_until_ready(out_nhwc)
    assert jnp.allclose(out_nhwc, ref, atol=1e-4, rtol=1e-4)

    # --- padding path (H, W not divisible by p), f32 compute ---
    x2 = jax.random.normal(k_x, (B, C, 13, 10), dtype=jnp.float32)
    out2, Hc2, Wc2 = patch_embed_forward(x2, weight, bias, patch_size=p,
                                         compute_dtype=jnp.float32)
    out2 = jax.block_until_ready(out2)
    x2p = jnp.pad(x2, ((0, 0), (0, 0), (0, (-13) % p), (0, (-10) % p)))
    ref2 = ref_patch_embed(x2p, Hc2, Wc2)
    assert out2.shape == (B, Hc2 * Wc2, E)
    assert jnp.allclose(out2, ref2, atol=1e-4, rtol=1e-4)

    # --- default path (bf16 compute for x/weight, f32 accumulate, f32 output) ---
    out_bf, _, _ = patch_embed_forward(x, weight, bias, patch_size=p)
    out_bf = jax.block_until_ready(out_bf)
    assert out_bf.dtype == x.dtype
    assert jnp.allclose(out_bf.astype(jnp.float32), ref, atol=3e-2, rtol=3e-2)

    print("KERNEL_OK")
</pallas_src>

<mosaic_0001>
module attributes {stable_mosaic.version = 11 : i64} {
  func.func @_patch_proj_kernel(%arg0: i32, %arg1: memref<16x48xf32, #tpu.memory_space<vmem>>, %arg2: memref<48x96xf32, #tpu.memory_space<vmem>>, %arg3: memref<1x96xf32, #tpu.memory_space<vmem>>, %arg4: memref<16x96xf32, #tpu.memory_space<vmem>>) attributes {dimension_semantics = [#tpu.dimension_semantics<parallel>], iteration_bounds = array<i64: 2>, scalar_prefetch = 0 : i64, scratch_operands = 0 : i64, tpu.core_type = #tpu.core_type<tc>, window_params = [{transform_indices = @transform_0, window_bounds = array<i64: 16, 48>}, {pipeline_mode = #tpu.pipeline_mode<synchronous>, transform_indices = @transform_1, window_bounds = array<i64: 48, 96>}, {pipeline_mode = #tpu.pipeline_mode<synchronous>, transform_indices = @transform_2, window_bounds = array<i64: 1, 96>}, {transform_indices = @transform_3, window_bounds = array<i64: 16, 96>}]} {
    %c0 = arith.constant 0 : index
    %c0_0 = arith.constant 0 : index
    %0 = vector.load %arg1[%c0, %c0_0] : memref<16x48xf32, #tpu.memory_space<vmem>>, vector<16x48xf32>
    %c0_1 = arith.constant 0 : index
    %c0_2 = arith.constant 0 : index
    %1 = vector.load %arg2[%c0_1, %c0_2] : memref<48x96xf32, #tpu.memory_space<vmem>>, vector<48x96xf32>
    %cst = arith.constant dense<0.000000e+00> : vector<16x96xf32>
    %2 = tpu.matmul %0, %1, %cst {dimension_numbers = #tpu.dot_dimension_numbers<[1], [0], [0], [1], [0, 0, 1, 1], [], []>} : vector<16x48xf32>, vector<48x96xf32>, vector<16x96xf32> -> vector<16x96xf32>
    %c0_3 = arith.constant 0 : index
    %c0_4 = arith.constant 0 : index
    %3 = vector.load %arg3[%c0_3, %c0_4] : memref<1x96xf32, #tpu.memory_space<vmem>>, vector<1x96xf32>
    %4 = vector.broadcast %3 : vector<1x96xf32> to vector<16x96xf32>
    %5 = arith.addf %2, %4 : vector<16x96xf32>
    %c0_5 = arith.constant 0 : index
    %c0_6 = arith.constant 0 : index
    %6 = vector.load %arg4[%c0_5, %c0_6] : memref<16x96xf32, #tpu.memory_space<vmem>>, vector<16x96xf32>
    tpu.vector_store %arg4[%c0_5, %c0_6], %5 {strides = array<i32>} : memref<16x96xf32, #tpu.memory_space<vmem>>, vector<16x96xf32>,
    return
  }
  func.func @transform_0(%arg0: i32) -> (i32, i32) {
    %c0_i32 = arith.constant 0 : i32
    %c0_i32_0 = arith.constant 0 : i32
    return %arg0, %c0_i32 : i32, i32
  }
  func.func @transform_1(%arg0: i32) -> (i32, i32) {
    %c0_i32 = arith.constant 0 : i32
    %c0_i32_0 = arith.constant 0 : i32
    %c0_i32_1 = arith.constant 0 : i32
    return %c0_i32, %c0_i32_0 : i32, i32
  }
  func.func @transform_2(%arg0: i32) -> (i32, i32) {
    %c0_i32 = arith.constant 0 : i32
    %c0_i32_0 = arith.constant 0 : i32
    %c0_i32_1 = arith.constant 0 : i32
    return %c0_i32, %c0_i32_0 : i32, i32
  }
  func.func @transform_3(%arg0: i32) -> (i32, i32) {
    %c0_i32 = arith.constant 0 : i32
    %c0_i32_0 = arith.constant 0 : i32
    return %arg0, %c0_i32 : i32, i32
  }
}

</mosaic_0001>

<llo_original>
// kernel: tpu_custom_call.1
$region0: #{tpu_custom_call.1}
  #allocation0 [shape = 'u32[]', space=smem, size = 0x4, offset = 0x4, fixed_abs, tag = 'smem constant byte address 0x4 - core index']
  #allocation1 [shape = 'u32[144,128]{1,0:T(1,128)}', space=vmem, size = 0x12000, scoped, tag = 'internal scratch']
  %s0 = inlined_call_operand.hbm [shape: f32[32,48], index: 0, kind: input, shape index: {}]
  %s1 = inlined_call_operand.hbm [shape: f32[48,96], index: 1, kind: input, shape index: {}]
  %s2 = inlined_call_operand.vmem [shape: f32[1,96], index: 2, kind: input, shape index: {}]
  %s3 = inlined_call_operand.hbm [shape: f32[32,96], index: 3, kind: output, shape index: {}]
  %s4 = sld [smem:[#allocation0]]
  $region53: #{tpu_custom_call.1} parent=0
    _
  %s6 = ssub.s32 1, %s4
  %s7 = scalar_select 0, %s6, %s4
  $region1: #{tpu_custom_call.1} parent=0
    #allocation2 [shape = 'u8[16384]{0}', space=vmem, size = 0x4000, scoped, tag = 'input window, operand 0']
    #allocation3 [shape = 's32[2]{0}', space=sflag, size = 0x8, scoped, tag = 'scoped memory for tpu_custom_call.1']
    #allocation4 [shape = 's32[2]{0}', space=sflag, size = 0x8, scoped, tag = 'scoped memory for tpu_custom_call.1']
    #allocation5 [shape = 'u8[24576]{0}', space=vmem, size = 0x6000, scoped, tag = 'input window, operand 1, single buffered']
    #allocation6 [shape = 's32[1]{0}', space=sflag, size = 0x4, scoped, tag = 'scoped memory for tpu_custom_call.1']
    #allocation7 [shape = 'u8[16384]{0}', space=vmem, size = 0x4000, scoped, tag = 'output window, operand 0']
    %8 = vsyncpa [#allocation3], 0
    %s9 = scalar_lea.sflag [#allocation3], 1
    %10 = vsyncpa %s9, 0
    %11 = vsyncpa [#allocation6], 0
    %12 = vsyncpa [#allocation4], 0
    %s13 = scalar_lea.sflag [#allocation4], 1
    %14 = vsyncpa %s13, 0
    loop: start=0, step=1, limit=4
    $region2: #{tpu_custom_call.1} parent=1 // loop_pre_header
      _
    $region3: #{tpu_custom_call.1} parent=1 // loop_header
      %s16 = sphi 0, %s20
      %p17 = scmp.ge.s32.totalorder %s16, 4
      %s26 = sphi 0, %s28
      %s29 = sphi 0, %s26
      %s30 = sphi 0, %s29
      %s46 = sphi 0, %s30
      %s50 = sphi 0, %s50
      %s52 = sphi 0, %s50
      %s53 = sphi 0, %s52
      %s67 = sphi 0, %s53
      %s71 = sphi 0, %s71
      %s73 = sphi 0, %s71
      %s74 = sphi 0, %s73
      %s88 = sphi 0, %s74
      %s94 = sphi 0, %s96
      %s97 = sphi 0, %s94
      %s98 = sphi 0, %s97
      %s114 = sphi 0, %s98
    $region4: #{tpu_custom_call.1} parent=1 // loop_header_branch
      %19 = sbr.rel (%p17) target = $region8
    $region5: #{tpu_custom_call.1} parent=1 // loop_body
      %s21 = ssub.s32 %s16, 1
      %s22 = ssub.s32 %s16, 2
      %s23 = sadd.s32 %s16, 1
      %s24 = ssub.s32 %s16, %s23
      %p25 = scmp.eq.s32.totalorder %s24, 0
      %s27 = sadd.s32 %s26, 1
      %s28 = scalar_select %p25, %s26, %s27
      %p31 = pneg %p25
      %p32 = scmp.eq.s32.totalorder %s16, 1
      %p33 = por %p31, %p32
      %p34 = scmp.ne.s32.totalorder %s26, %s29
      %p35 = scmp.eq.s32.totalorder %s16, 0
      %p36 = por %p34, %p35
      %p37 = scmp.ne.s32.totalorder %s26, %s29
      %p38 = scmp.eq.s32.totalorder %s21, 1
      %p39 = por %p37, %p38
      %p40 = scmp.ne.s32.totalorder %s29, %s30
      %p41 = scmp.eq.s32.totalorder %s21, 0
      %p42 = por %p40, %p41
      %p43 = scmp.ne.s32.totalorder %s29, %s30
      %p44 = scmp.eq.s32.totalorder %s22, 1
      %p45 = por %p43, %p44
      %p47 = scmp.ne.s32.totalorder %s30, %s46
      %p48 = scmp.eq.s32.totalorder %s22, 0
      %p49 = por %p47, %p48
      %s51 = sadd.s32 %s50, 1
      %p54 = scmp.eq.s32.totalorder %s16, 1
      %p55 = scmp.ne.s32.totalorder %s50, %s52
      %p56 = scmp.eq.s32.totalorder %s16, 0
      %p57 = por %p55, %p56
      %p58 = scmp.ne.s32.totalorder %s50, %s52
      %p59 = scmp.eq.s32.totalorder %s21, 1
      %p60 = por %p58, %p59
      %p61 = scmp.ne.s32.totalorder %s52, %s53
      %p62 = scmp.eq.s32.totalorder %s21, 0
      %p63 = por %p61, %p62
      %p64 = scmp.ne.s32.totalorder %s52, %s53
      %p65 = scmp.eq.s32.totalorder %s22, 1
      %p66 = por %p64, %p65
      %p68 = scmp.ne.s32.totalorder %s53, %s67
      %p69 = scmp.eq.s32.totalorder %s22, 0
      %p70 = por %p68, %p69
      %s72 = sadd.s32 %s71, 1
      %p75 = scmp.eq.s32.totalorder %s16, 1
      %p76 = scmp.ne.s32.totalorder %s71, %s73
      %p77 = scmp.eq.s32.totalorder %s16, 0
      %p78 = por %p76, %p77
      %p79 = scmp.ne.s32.totalorder %s71, %s73
      %p80 = scmp.eq.s32.totalorder %s21, 1
      %p81 = por %p79, %p80
      %p82 = scmp.ne.s32.totalorder %s73, %s74
      %p83 = scmp.eq.s32.totalorder %s21, 0
      %p84 = por %p82, %p83
      %p85 = scmp.ne.s32.totalorder %s73, %s74
      %p86 = scmp.eq.s32.totalorder %s22, 1
      %p87 = por %p85, %p86
      %p89 = scmp.ne.s32.totalorder %s74, %s88
      %p90 = scmp.eq.s32.totalorder %s22, 0
      %p91 = por %p89, %p90
      %s92 = ssub.s32 %s16, %s23
      %p93 = scmp.eq.s32.totalorder %s92, 0
      %s95 = sadd.s32 %s94, 1
      %s96 = scalar_select %p93, %s94, %s95
      %p99 = pneg %p93
      %p100 = scmp.eq.s32.totalorder %s16, 1
      %p101 = por %p99, %p100
      %p102 = scmp.ne.s32.totalorder %s94, %s97
      %p103 = scmp.eq.s32.totalorder %s16, 0
      %p104 = por %p102, %p103
      %p105 = scmp.ne.s32.totalorder %s94, %s97
      %p106 = scmp.eq.s32.totalorder %s21, 1
      %p107 = por %p105, %p106
      %p108 = scmp.ne.s32.totalorder %s97, %s98
      %p109 = scmp.eq.s32.totalorder %s21, 0
      %p110 = por %p108, %p109
      %p111 = scmp.ne.s32.totalorder %s97, %s98
      %p112 = scmp.eq.s32.totalorder %s22, 1
      %p113 = por %p111, %p112
      %p115 = scmp.ne.s32.totalorder %s98, %s114
      %p116 = scmp.eq.s32.totalorder %s22, 0
      %p117 = por %p115, %p116
      %p118 = scmp.le.s32.totalorder 1, %s16
      %p119 = scmp.lt.s32.totalorder %s16, 3
      %p120 = pnand %p118, %p119
      %p121 = pneg %p120
      // Predicated region
      $region9: #{tpu_custom_call.1} parent=5 // pred_check
        _
      $region10: #{tpu_custom_call.1} parent=5 // pred_check_branch
        %123 = sbr.rel (%p120) target = $region12
      $region11: #{tpu_custom_call.1} parent=5 // pred_region
        %s124 = ssub.s32 %s16, 1
        // Predicated region
        $region13: #{tpu_custom_call.1} parent=11 // pred_check
          %p125 = pneg %p63
        $region14: #{tpu_custom_call.1} parent=11 // pred_check_branch
          %127 = sbr.rel (%p125) target = $region16
        $region15: #{tpu_custom_call.1} parent=11 // pred_region
          %s129 = ssub.s32 768, 768
          %130 = vsyncadd [#allocation6], %s129
          %s131 = sshll.u32 [#allocation5], 4
          %s132 = int_to_ptr.vmem [resolvable:$true] %s131
          %137 = dma.hbm_to_vmem [thread:$0]  %s1, 768, %s132, [#allocation6], 128, 128, 8
        $region16: #{tpu_custom_call.1} parent=11 // pred_fallthru
          _
        // Predicated region
        $region17: #{tpu_custom_call.1} parent=11 // pred_check
          %p138 = pneg %p84
        $region18: #{tpu_custom_call.1} parent=11 // pred_check_branch
          %140 = sbr.rel (%p138) target = $region20
        $region19: #{tpu_custom_call.1} parent=11 // pred_region
          _
        $region20: #{tpu_custom_call.1} parent=11 // pred_fallthru
          _
      $region12: #{tpu_custom_call.1} parent=5 // pred_fallthru
        _
      %p141 = scmp.lt.s32.totalorder %s16, 2
      // Predicated region
      $region21: #{tpu_custom_call.1} parent=5 // pred_check
        %p142 = pneg %p141
      $region22: #{tpu_custom_call.1} parent=5 // pred_check_branch
        %144 = sbr.rel (%p142) target = $region24
      $region23: #{tpu_custom_call.1} parent=5 // pred_region
        // Predicated region
        $region25: #{tpu_custom_call.1} parent=23 // pred_check
          %p145 = pneg %p36
        $region26: #{tpu_custom_call.1} parent=23 // pred_check_branch
          %147 = sbr.rel (%p145) target = $region28
        $region27: #{tpu_custom_call.1} parent=23 // pred_region
          %s148 = sand.u32 %s26, 1
          %s149 = scalar_lea.sflag [#allocation3], %s148
          %s150 = sand.u32 %s26, 1
          %s151 = smul.addr %s150, 16
          %s152 = scalar_lea.vmem [#allocation2], %s151
          %s153 = smul.u32 2, %s16
          %s155 = ssub.s32 256, 256
          %156 = vsyncadd %s149, %s155
          %s157 = smul.addr %s153, 128
          %s158 = scalar_lea.hbm %s0, %s157
          %s159 = sshll.u32 %s152, 4
          %s160 = int_to_ptr.vmem [resolvable:$true] %s159
          %165 = dma.hbm_to_vmem [thread:$0]  %s158, 256, %s160, %s149, 128, 128, 8
        $region28: #{tpu_custom_call.1} parent=23 // pred_fallthru
          _
      $region24: #{tpu_custom_call.1} parent=5 // pred_fallthru
        _
      %p166 = scmp.le.s32.totalorder 1, %s16
      %p167 = scmp.lt.s32.totalorder %s16, 3
      %p168 = pnand %p166, %p167
      %p169 = pneg %p168
      // Predicated region
      $region29: #{tpu_custom_call.1} parent=5 // pred_check
        _
      $region30: #{tpu_custom_call.1} parent=5 // pred_check_branch
        %171 = sbr.rel (%p168) target = $region32
      $region31: #{tpu_custom_call.1} parent=5 // pred_region
        %s172 = ssub.s32 %s16, 1
        %s173 = sand.u32 %s29, 1
        %s174 = scalar_lea.sflag [#allocation3], %s173
        %s175 = sand.u32 %s29, 1
        %s176 = smul.addr %s175, 16
        %s177 = scalar_lea.vmem [#allocation2], %s176
        // Predicated region
        $region33: #{tpu_custom_call.1} parent=31 // pred_check
          %p178 = pneg %p42
        $region34: #{tpu_custom_call.1} parent=31 // pred_check_branch
          %180 = sbr.rel (%p178) target = $region36
        $region35: #{tpu_custom_call.1} parent=31 // pred_region
          %181 = dma.done %s174, 256
        $region36: #{tpu_custom_call.1} parent=31 // pred_fallthru
          _
        // Predicated region
        $region37: #{tpu_custom_call.1} parent=31 // pred_check
          %p182 = pneg %p63
        $region38: #{tpu_custom_call.1} parent=31 // pred_check_branch
          %184 = sbr.rel (%p182) target = $region40
        $region39: #{tpu_custom_call.1} parent=31 // pred_region
          %185 = dma.done [#allocation6], 768
        $region40: #{tpu_custom_call.1} parent=31 // pred_fallthru
          _
        %s186 = sand.u32 %s29, 1
        %s187 = scalar_lea.sflag [#allocation3], %s186
        %s188 = sand.u32 %s29, 1
        %s189 = smul.addr %s188, 16
        %s190 = scalar_lea.vmem [#allocation2], %s189
        %p191 = pneg %p42
        %p192 = pneg %p39
        %p193 = pneg %p63
        %p194 = pneg %p60
        %p195 = pneg %p84
        %p196 = pneg %p81
        %p197 = pneg %p110
        %p198 = pneg %p107
        %s199 = sand.u32 %s97, 1
        %s200 = scalar_lea.sflag [#allocation4], %s199
        %s201 = sand.u32 %s97, 1
        %s202 = smul.addr %s201, 16
        %s203 = scalar_lea.vmem [#allocation7], %s202
        %s204 = smul.u32 2, %s21
        %s205 = smul.u32 2, %s21
        %v206 = vld [vmem:[%s177] sm:$0xff]
        %v207 = vld [vmem:[%s177 + $0x8] sm:$0xff]
        %v208 = vld [vmem:[#allocation5] sm:$0xff]
        %v209 = vld [vmem:[#allocation5 + $0x8] sm:$0xff]
        %v210 = vld [vmem:[#allocation5 + $0x10] sm:$0xff]
        %v211 = vld [vmem:[#allocation5 + $0x18] sm:$0xff]
        %v212 = vld [vmem:[#allocation5 + $0x20] sm:$0xff]
        %v213 = vld [vmem:[#allocation5 + $0x28] sm:$0xff]
        %v214 = vld [vmem:[%s2] sm:$0x1]
        %v216 = vlaneseq
        %v217 = vshrl.u32 %v216, 7
        %v218 = vsub.s32 0, %v217
        %v219 = vrot.slane %v214, %v218
        %vm221 = vcmask 392192
        %v223 = vsel %vm221, %v206, 0
        %v226 = vsel %vm221, %v207, 0
        %228 = vmatprep.subr.mxu0 0.0
        %229 = vmatpush1.msra.mxu0 %v208
        %230 = vmatprep.subr.mxu0 0.0
        %231 = vmatpush1.msra.mxu0 %v209
        %232 = vmatprep.subr.mxu0 0.0
        %233 = vmatpush1.msra.mxu0 %v210
        %234 = vmatprep.subr.mxu0 0.0
        %235 = vmatpush1.msra.mxu0 %v211
        %236 = vmatprep.subr.mxu0 0.0
        %237 = vmatpush1.msra.mxu0 %v212
        %238 = vmatprep.subr.mxu0 0.0
        %239 = vmatpush1.msra.mxu0 %v213
        %240 = vmatprep.subr.mxu0 0.0
        %241 = vmatpush1.msra.mxu0 0.0
        %242 = vmatprep.subr.mxu0 0.0
        %243 = vmatpush1.msra.mxu0 0.0
        %244 = vmatprep.subr.mxu0 0.0
        %245 = vmatpush1.msra.mxu0 0.0
        %246 = vmatprep.subr.mxu0 0.0
        %247 = vmatpush1.msra.mxu0 0.0
        %248 = vmatprep.subr.mxu0 0.0
        %249 = vmatpush1.msra.mxu0 0.0
        %250 = vmatprep.subr.mxu0 0.0
        %251 = vmatpush1.msra.mxu0 0.0
        %252 = vmatprep.subr.mxu0 0.0
        %253 = vmatpush1.msra.mxu0 0.0
        %254 = vmatprep.subr.mxu0 0.0
        %255 = vmatpush1.msra.mxu0 0.0
        %256 = vmatprep.subr.mxu0 0.0
        %257 = vmatpush1.msra.mxu0 0.0
        %258 = vmatprep.subr.mxu0 0.0
        %259 = vmatpush1.msra.mxu0 0.0
        %260 = vmatprep.subr.mxu0 0.0
        %261 = vmatpush1.msra.mxu0 0.0
        %262 = vmatprep.subr.mxu0 0.0
        %263 = vmatpush1.msra.mxu0 0.0
        %264 = vmatprep.subr.mxu0 0.0
        %265 = vmatpush1.msra.mxu0 0.0
        %266 = vmatprep.subr.mxu0 0.0
        %267 = vmatpush1.msra.mxu0 0.0
        %268 = vmatprep.subr.mxu0 0.0
        %269 = vmatpush1.msra.mxu0 0.0
        %270 = vmatprep.subr.mxu0 0.0
        %271 = vmatpush1.msra.mxu0 0.0
        %272 = vmatprep.subr.mxu0 0.0
        %273 = vmatpush1.msra.mxu0 0.0
        %274 = vmatprep.subr.mxu0 0.0
        %275 = vmatpush1.msra.mxu0 0.0
        %276 = vmatprep.subr.mxu0 0.0
        %277 = vmatpush1.msra.mxu0 0.0
        %278 = vmatprep.subr.mxu0 0.0
        %279 = vmatpush1.msra.mxu0 0.0
        %280 = vmatprep.subr.mxu0 0.0
        %281 = vmatpush1.msra.mxu0 0.0
        %282 = vmatprep.subr.mxu0 0.0
        %283 = vmatpush1.msra.mxu0 0.0
        %284 = vmatprep.subr.mxu0 0.0
        %285 = vmatpush1.msra.mxu0 0.0
        %286 = vmatprep.subr.mxu0 0.0
        %287 = vmatpush1.msra.mxu0 0.0
        %288 = vmatprep.subr.mxu0 0.0
        %289 = vmatpush1.msra.mxu0 0.0
        %290 = vmatprep.subr.mxu0 0.0
        %291 = vmatpush1.msra.mxu0 0.0
        %292 = vmatprep.mubr.f32.mxu0 0.0
        %293 = vmatmul.mubr.f32.gmra.mrb[0].mxu0 %v223
        %v294 = vpop.f32.mrb[0].mxu0
        %v295 = vadd.f32 %v219, %v294
        %v296 = vpop.f32.mrb[0].mxu0
        %297 = vmatprep.mubr.f32.mxu0 0.0
        %298 = vmatmul.mubr.f32.gmra.mrb[0].mxu0 %v226
        %v299 = vpop.f32.mrb[0].mxu0
        %v300 = vadd.f32 %v219, %v299
        %v301 = vpop.f32.mrb[0].mxu0
        %302 = vdwg.mxu0
        %vm303 = vcmask 785408
        %304 = vst.msk [vmem:[%s203] sm:$0xff] %vm303, %v295
        %305 = vst.msk [vmem:[%s203 + $0x8] sm:$0xff] %vm303, %v300
        %s306 = sand.u32 %s97, 1
        %s307 = scalar_lea.sflag [#allocation4], %s306
        %s308 = sand.u32 %s97, 1
        %s309 = smul.addr %s308, 16
        %s310 = scalar_lea.vmem [#allocation7], %s309
        // Predicated region
        $region41: #{tpu_custom_call.1} parent=31 // pred_check
          %p311 = pneg %p107
        $region42: #{tpu_custom_call.1} parent=31 // pred_check_branch
          %313 = sbr.rel (%p311) target = $region44
        $region43: #{tpu_custom_call.1} parent=31 // pred_region
          %s314 = smul.u32 2, %s21
          %s316 = ssub.s32 256, 256
          %317 = vsyncadd %s307, %s316
          %s318 = smul.addr %s314, 128
          %s319 = scalar_lea.hbm %s3, %s318
          %s320 = sshll.u32 %s310, 4
          %s321 = int_to_ptr.vmem [resolvable:$true] %s320
          %326 = dma.vmem_to_hbm [thread:$0]  %s321, 256, %s319, %s307, 128, 128, 8
        $region44: #{tpu_custom_call.1} parent=31 // pred_fallthru
          _
      $region32: #{tpu_custom_call.1} parent=5 // pred_fallthru
        _
      %p327 = scmp.le.s32.totalorder 2, %s16
      // Predicated region
      $region45: #{tpu_custom_call.1} parent=5 // pred_check
        %p328 = pneg %p327
      $region46: #{tpu_custom_call.1} parent=5 // pred_check_branch
        %330 = sbr.rel (%p328) target = $region48
      $region47: #{tpu_custom_call.1} parent=5 // pred_region
        %s331 = ssub.s32 %s16, 2
        // Predicated region
        $region49: #{tpu_custom_call.1} parent=47 // pred_check
          %p332 = pneg %p113
        $region50: #{tpu_custom_call.1} parent=47 // pred_check_branch
          %334 = sbr.rel (%p332) target = $region52
        $region51: #{tpu_custom_call.1} parent=47 // pred_region
          %s335 = sand.u32 %s98, 1
          %s336 = scalar_lea.sflag [#allocation4], %s335
          %s337 = sand.u32 %s98, 1
          %s338 = smul.addr %s337, 16
          %s339 = scalar_lea.vmem [#allocation7], %s338
          %340 = dma.done %s336, 256
        $region52: #{tpu_custom_call.1} parent=47 // pred_fallthru
          _
      $region48: #{tpu_custom_call.1} parent=5 // pred_fallthru
        _
    $region6: #{tpu_custom_call.1} parent=1 // loop_footer
      %s20 = sadd.s32 1, %s16
    $region7: #{tpu_custom_call.1} parent=1 // loop_footer_branch
      %15 = sbr.rel target = $region3
    $region8: #{tpu_custom_call.1} parent=1 // loop_exit
      _
    %341 = vsyncpa [#allocation3], 1
    %s342 = scalar_lea.sflag [#allocation3], 1
    %343 = vsyncpa %s342, 1
    %344 = vsyncpa [#allocation6], 1
    %345 = vsyncpa [#allocation4], 1
    %s346 = scalar_lea.sflag [#allocation4], 1
    %347 = vsyncpa %s346, 1

</llo_original>
